<compile_context>
chip_gen: v6e
topology: v6e:2x2x1
jax: 0.10.0
libtpu: 0.0.40
codegen_flags: <defaults>
</compile_context>

<pallas_src>
import jax
import jax.numpy as jnp
from jax import lax
from jax.experimental import pallas as pl
from jax.experimental.pallas import tpu as pltpu

NUM_ITERATIONS = 10
LEARNING_RATE = 0.1


def _round_up(x, mult):
    return ((x + mult - 1) // mult) * mult


def _l2_recon_kernel(a_ref, y_ref, x_ref):
    # a_ref: (Mp, Np)  padded linear-operator matrix, VMEM, bf16 (MXU-native)
    # y_ref: (Bp, Mp)  padded measured k-space data, VMEM, f32
    # x_ref: (Bp, Np)  padded reconstruction, VMEM, f32 (lane-dense: Np % 128 == 0)
    a = a_ref[...]                           # bf16
    y = y_ref[...].astype(jnp.bfloat16)      # tiny; cast once so c is single-pass bf16
    n_p = a_ref.shape[1]

    # Precompute once (2 single-pass bf16 MXU matmuls, f32 accumulation,
    # no explicit A^T ever materialized):
    #   G = A^T A   (Np, Np)   via dot_general contracting axis 0 of both operands
    #   c = y @ A   (Bp, Np)
    g = lax.dot_general(a, a, (((0,), (0,)), ((), ())),
                        preferred_element_type=jnp.float32)
    c = jnp.dot(y, a, preferred_element_type=jnp.float32)

    # Fold the GD update  x <- x - lr*(x G - c)  into  x <- x @ H + c_lr  with
    # H = I - lr*G (kept in bf16 as the loop's MXU operand) and c_lr = lr*c (f32),
    # both hoisted out of the loop.
    row = lax.broadcasted_iota(jnp.int32, (n_p, n_p), 0)
    col = lax.broadcasted_iota(jnp.int32, (n_p, n_p), 1)
    eye = (row == col).astype(jnp.float32)
    h = (eye - LEARNING_RATE * g).astype(jnp.bfloat16)
    c_lr = LEARNING_RATE * c

    # x0 = 0  =>  x1 = lr * (y @ A) = c_lr; run the remaining NUM_ITERATIONS - 1 steps.
    # bf16 operands into the MXU each step, f32 accumulation and f32 loop carry.
    x = c_lr

    def body(_, x):
        return jnp.dot(x.astype(jnp.bfloat16), h,
                       preferred_element_type=jnp.float32) + c_lr

    x = lax.fori_loop(0, NUM_ITERATIONS - 1, body, x, unroll=True)
    x_ref[...] = x
    # TODO(synk): if multiple independent y batches exist, concatenate them so each
    #   loop matmul streams >=128 (v5e) / >=256 (v6e/v7x) LHS rows instead of Bp=8.


def prepare_operator(a):
    """Pad + cast the (fixed) operator matrix once, outside the per-call hot path.

    a: (M, N) dense operator with forward(x) = x @ A.T, adjoint(y) = y @ A.
    Returns (a_padded_bf16, (M, N)).
    """
    m, n = a.shape
    mp = _round_up(m, 8)      # M is only a contraction / sublane dim -> multiple of 8
    np_ = _round_up(n, 128)   # N is the lane dim of A, c, G, H, x -> multiple of 128
    a_p = jnp.pad(a.astype(jnp.bfloat16), ((0, mp - m), (0, np_ - n)))
    return a_p, (m, n)


def l2_reconstruction(prepared_a, y_kspace):
    """Full GD reconstruction in one Pallas kernel invocation.

    prepared_a: output of prepare_operator(A)
    y_kspace:   (B, M) measured data
    returns     (B, N) reconstruction (matches the PyTorch module's forward)
    """
    a_p, (m, n) = prepared_a
    b, m2 = y_kspace.shape
    assert m == m2, "operator / data shape mismatch"
    if NUM_ITERATIONS == 0:   # reference module would return the untouched zero init
        return jnp.zeros((b, n), jnp.float32)

    mp, np_ = a_p.shape
    bp = _round_up(b, 8)      # sublane multiple; only y is padded per call
    # Zero padding is exact: padded rows/cols of A and y are zero, so the padded
    # entries of G, c and x provably stay zero and the leading (B, N) block of the
    # result equals the unpadded computation.
    y_p = jnp.pad(y_kspace.astype(jnp.float32), ((0, bp - b), (0, mp - m)))

    x_p = pl.pallas_call(
        _l2_recon_kernel,
        out_shape=jax.ShapeDtypeStruct((bp, np_), jnp.float32),
        in_specs=[
            pl.BlockSpec(memory_space=pltpu.MemorySpace.VMEM),  # A (padded, bf16)
            pl.BlockSpec(memory_space=pltpu.MemorySpace.VMEM),  # y (padded, f32)
        ],
        out_specs=pl.BlockSpec(memory_space=pltpu.MemorySpace.VMEM),
        # Whole problem fits trivially in VMEM at these sizes (single program, grid=()).
        # TODO(synk): for MRI-sized N the Gram path inverts (G costs M*N^2 MACs and
        #   f32 H is 4*N^2 bytes, exceeding v7x's 64 MiB VMEM by N=4096): switch to
        #   the residual form streaming A with a tiled grid (reduction axis last,
        #   "arbitrary"; 256-multiple tiles on v6e/v7x, 128 on v5e), raise
        #   vmem_limit_bytes via pltpu.CompilerParams (v5e's default scoped limit is
        #   16 MiB), and add a "parallel" batch-tile axis so v7x's 2nd TC is used.
    )(a_p, y_p)
    return x_p[:b, :n]


def _reference(a, y):
    """Plain-JAX f32 mirror of the PyTorch forward (residual form) for a sanity check."""
    x = jnp.zeros((y.shape[0], a.shape[1]), dtype=jnp.float32)
    for _ in range(NUM_ITERATIONS):
        residual = jnp.dot(x, a.T, precision=lax.Precision.HIGHEST) - y
        grad = jnp.dot(residual, a, precision=lax.Precision.HIGHEST)
        x = x - LEARNING_RATE * grad
    return x


if __name__ == "__main__":
    key = jax.random.PRNGKey(0)
    k_a, k_y = jax.random.split(key)

    B, M, N = 2, 32, 32  # batch, k-space measurements, image dimension
    # Deterministic synthetic "linear operator" weights (not a checkpoint).
    # Scale keeps the GD iteration (spectral radius of lr * A^T A) stable.
    a = jax.random.normal(k_a, (M, N), dtype=jnp.float32) * 0.2
    y_kspace = jax.random.normal(k_y, (B, M), dtype=jnp.float32)

    prepared = prepare_operator(a)          # once per operator, not per call
    x_recon = l2_reconstruction(prepared, y_kspace)
    jax.block_until_ready(x_recon)

    x_ref = _reference(a, y_kspace)
    assert x_recon.shape == (B, N)
    # bf16 MXU operands (f32 accumulation) vs. the f32 residual-form reference:
    # accumulated error over the 10 folded iterations is O(1e-2), hence the
    # loosened (but still meaningful) tolerance.
    assert jnp.allclose(x_recon, x_ref, atol=5e-2, rtol=5e-2), (
        "max abs err = %f" % float(jnp.max(jnp.abs(x_recon - x_ref))))

    print("KERNEL_OK")
</pallas_src>

<mosaic_0001>
module attributes {stable_mosaic.version = 11 : i64} {
  func.func @_l2_recon_kernel(%arg0: memref<32x128xbf16, #tpu.memory_space<vmem>>, %arg1: memref<8x32xf32, #tpu.memory_space<vmem>>, %arg2: memref<8x128xf32, #tpu.memory_space<vmem>>) attributes {dimension_semantics = [], scalar_prefetch = 0 : i64, scratch_operands = 0 : i64, tpu.core_type = #tpu.core_type<tc>} {
    %c0 = arith.constant 0 : index
    %c0_0 = arith.constant 0 : index
    %0 = vector.load %arg0[%c0, %c0_0] : memref<32x128xbf16, #tpu.memory_space<vmem>>, vector<32x128xbf16>
    %c0_1 = arith.constant 0 : index
    %c0_2 = arith.constant 0 : index
    %1 = vector.load %arg1[%c0_1, %c0_2] : memref<8x32xf32, #tpu.memory_space<vmem>>, vector<8x32xf32>
    %2 = arith.truncf %1 : vector<8x32xf32> to vector<8x32xbf16>
    %cst = arith.constant dense<0.000000e+00> : vector<128x128xf32>
    %3 = tpu.matmul %0, %0, %cst {dimension_numbers = #tpu.dot_dimension_numbers<[0], [0], [1], [1], [0, 1, 1, 1], [], []>} : vector<32x128xbf16>, vector<32x128xbf16>, vector<128x128xf32> -> vector<128x128xf32>
    %cst_3 = arith.constant dense<0.000000e+00> : vector<8x128xf32>
    %4 = tpu.matmul %2, %0, %cst_3 {dimension_numbers = #tpu.dot_dimension_numbers<[1], [0], [0], [1], [0, 0, 1, 1], [], []>} : vector<8x32xbf16>, vector<32x128xbf16>, vector<8x128xf32> -> vector<8x128xf32>
    %5 = tpu.iota {dimensions = array<i32: 0>} : vector<128x128xi32>
    %6 = tpu.iota {dimensions = array<i32: 1>} : vector<128x128xi32>
    %7 = arith.cmpi eq, %5, %6 : vector<128x128xi32>
    %8 = arith.extui %7 : vector<128x128xi1> to vector<128x128xi32>
    %9 = arith.sitofp %8 : vector<128x128xi32> to vector<128x128xf32>
    %cst_4 = arith.constant 1.000000e-01 : f32
    %10 = vector.broadcast %cst_4 : f32 to vector<128x128xf32>
    %11 = arith.mulf %10, %3 : vector<128x128xf32>
    %12 = arith.subf %9, %11 : vector<128x128xf32>
    %13 = arith.truncf %12 : vector<128x128xf32> to vector<128x128xbf16>
    %cst_5 = arith.constant 1.000000e-01 : f32
    %14 = vector.broadcast %cst_5 : f32 to vector<8x128xf32>
    %15 = arith.mulf %14, %4 : vector<8x128xf32>
    %c0_i32 = arith.constant 0 : i32
    %16 = arith.truncf %15 : vector<8x128xf32> to vector<8x128xbf16>
    %cst_6 = arith.constant dense<0.000000e+00> : vector<8x128xf32>
    %17 = tpu.matmul %16, %13, %cst_6 {dimension_numbers = #tpu.dot_dimension_numbers<[1], [0], [0], [1], [0, 0, 1, 1], [], []>} : vector<8x128xbf16>, vector<128x128xbf16>, vector<8x128xf32> -> vector<8x128xf32>
    %18 = arith.addf %17, %15 : vector<8x128xf32>
    %c1_i32 = arith.constant 1 : i32
    %19 = arith.truncf %18 : vector<8x128xf32> to vector<8x128xbf16>
    %cst_7 = arith.constant dense<0.000000e+00> : vector<8x128xf32>
    %20 = tpu.matmul %19, %13, %cst_7 {dimension_numbers = #tpu.dot_dimension_numbers<[1], [0], [0], [1], [0, 0, 1, 1], [], []>} : vector<8x128xbf16>, vector<128x128xbf16>, vector<8x128xf32> -> vector<8x128xf32>
    %21 = arith.addf %20, %15 : vector<8x128xf32>
    %c2_i32 = arith.constant 2 : i32
    %22 = arith.truncf %21 : vector<8x128xf32> to vector<8x128xbf16>
    %cst_8 = arith.constant dense<0.000000e+00> : vector<8x128xf32>
    %23 = tpu.matmul %22, %13, %cst_8 {dimension_numbers = #tpu.dot_dimension_numbers<[1], [0], [0], [1], [0, 0, 1, 1], [], []>} : vector<8x128xbf16>, vector<128x128xbf16>, vector<8x128xf32> -> vector<8x128xf32>
    %24 = arith.addf %23, %15 : vector<8x128xf32>
    %c3_i32 = arith.constant 3 : i32
    %25 = arith.truncf %24 : vector<8x128xf32> to vector<8x128xbf16>
    %cst_9 = arith.constant dense<0.000000e+00> : vector<8x128xf32>
    %26 = tpu.matmul %25, %13, %cst_9 {dimension_numbers = #tpu.dot_dimension_numbers<[1], [0], [0], [1], [0, 0, 1, 1], [], []>} : vector<8x128xbf16>, vector<128x128xbf16>, vector<8x128xf32> -> vector<8x128xf32>
    %27 = arith.addf %26, %15 : vector<8x128xf32>
    %c4_i32 = arith.constant 4 : i32
    %28 = arith.truncf %27 : vector<8x128xf32> to vector<8x128xbf16>
    %cst_10 = arith.constant dense<0.000000e+00> : vector<8x128xf32>
    %29 = tpu.matmul %28, %13, %cst_10 {dimension_numbers = #tpu.dot_dimension_numbers<[1], [0], [0], [1], [0, 0, 1, 1], [], []>} : vector<8x128xbf16>, vector<128x128xbf16>, vector<8x128xf32> -> vector<8x128xf32>
    %30 = arith.addf %29, %15 : vector<8x128xf32>
    %c5_i32 = arith.constant 5 : i32
    %31 = arith.truncf %30 : vector<8x128xf32> to vector<8x128xbf16>
    %cst_11 = arith.constant dense<0.000000e+00> : vector<8x128xf32>
    %32 = tpu.matmul %31, %13, %cst_11 {dimension_numbers = #tpu.dot_dimension_numbers<[1], [0], [0], [1], [0, 0, 1, 1], [], []>} : vector<8x128xbf16>, vector<128x128xbf16>, vector<8x128xf32> -> vector<8x128xf32>
    %33 = arith.addf %32, %15 : vector<8x128xf32>
    %c6_i32 = arith.constant 6 : i32
    %34 = arith.truncf %33 : vector<8x128xf32> to vector<8x128xbf16>
    %cst_12 = arith.constant dense<0.000000e+00> : vector<8x128xf32>
    %35 = tpu.matmul %34, %13, %cst_12 {dimension_numbers = #tpu.dot_dimension_numbers<[1], [0], [0], [1], [0, 0, 1, 1], [], []>} : vector<8x128xbf16>, vector<128x128xbf16>, vector<8x128xf32> -> vector<8x128xf32>
    %36 = arith.addf %35, %15 : vector<8x128xf32>
    %c7_i32 = arith.constant 7 : i32
    %37 = arith.truncf %36 : vector<8x128xf32> to vector<8x128xbf16>
    %cst_13 = arith.constant dense<0.000000e+00> : vector<8x128xf32>
    %38 = tpu.matmul %37, %13, %cst_13 {dimension_numbers = #tpu.dot_dimension_numbers<[1], [0], [0], [1], [0, 0, 1, 1], [], []>} : vector<8x128xbf16>, vector<128x128xbf16>, vector<8x128xf32> -> vector<8x128xf32>
    %39 = arith.addf %38, %15 : vector<8x128xf32>
    %c8_i32 = arith.constant 8 : i32
    %40 = arith.truncf %39 : vector<8x128xf32> to vector<8x128xbf16>
    %cst_14 = arith.constant dense<0.000000e+00> : vector<8x128xf32>
    %41 = tpu.matmul %40, %13, %cst_14 {dimension_numbers = #tpu.dot_dimension_numbers<[1], [0], [0], [1], [0, 0, 1, 1], [], []>} : vector<8x128xbf16>, vector<128x128xbf16>, vector<8x128xf32> -> vector<8x128xf32>
    %42 = arith.addf %41, %15 : vector<8x128xf32>
    %c0_15 = arith.constant 0 : index
    %c0_16 = arith.constant 0 : index
    %43 = vector.load %arg2[%c0_15, %c0_16] : memref<8x128xf32, #tpu.memory_space<vmem>>, vector<8x128xf32>
    tpu.vector_store %arg2[%c0_15, %c0_16], %42 {strides = array<i32>} : memref<8x128xf32, #tpu.memory_space<vmem>>, vector<8x128xf32>,
    return
  }
}

</mosaic_0001>

<llo_original>
// kernel: tpu_custom_call.1
$region0: #{tpu_custom_call.1}
  #allocation0 [shape = 'u32[]', space=smem, size = 0x4, offset = 0x4, fixed_abs, tag = 'smem constant byte address 0x4 - core index']
  #allocation1 [shape = 'u32[144,128]{1,0:T(1,128)}', space=vmem, size = 0x12000, scoped, tag = 'internal scratch']
  %s0 = inlined_call_operand.hbm [shape: bf16[32,128], index: 0, kind: input, shape index: {}]
  %s1 = inlined_call_operand.hbm [shape: f32[8,32], index: 1, kind: input, shape index: {}]
  %s2 = inlined_call_operand.hbm [shape: f32[8,128], index: 2, kind: output, shape index: {}]
  %s3 = sld [smem:[#allocation0]]
  $region26: #{tpu_custom_call.1} parent=0
    _
  %s5 = ssub.s32 1, %s3
  %s6 = scalar_select 0, %s5, %s3
  $region1: #{tpu_custom_call.1} parent=0
    #allocation2 [shape = 'u8[8192]{0}', space=vmem, size = 0x2000, scoped, tag = 'input window, operand 0, single buffered']
    #allocation3 [shape = 's32[1]{0}', space=sflag, size = 0x4, scoped, tag = 'scoped memory for tpu_custom_call.1']
    #allocation4 [shape = 's32[1]{0}', space=sflag, size = 0x4, scoped, tag = 'scoped memory for tpu_custom_call.1']
    #allocation5 [shape = 'u8[4096]{0}', space=vmem, size = 0x1000, scoped, tag = 'input window, operand 1, single buffered']
    #allocation6 [shape = 's32[1]{0}', space=sflag, size = 0x4, scoped, tag = 'scoped memory for tpu_custom_call.1']
    #allocation7 [shape = 'u8[4096]{0}', space=vmem, size = 0x1000, scoped, tag = 'output window, operand 0, single buffered']
    %7 = vsyncpa [#allocation3], 0
    %8 = vsyncpa [#allocation6], 0
    %9 = vsyncpa [#allocation4], 0
    // Predicated region
    $region2: #{tpu_custom_call.1} parent=1 // pred_check
      _
    $region3: #{tpu_custom_call.1} parent=1 // pred_check_branch
      %11 = sbr.rel (0) target = $region5
    $region4: #{tpu_custom_call.1} parent=1 // pred_region
      %s13 = ssub.s32 256, 256
      %14 = vsyncadd [#allocation3], %s13
      %s15 = sshll.u32 [#allocation2], 4
      %s16 = int_to_ptr.vmem [resolvable:$true] %s15
      %21 = dma.hbm_to_vmem [thread:$0]  %s0, 256, %s16, [#allocation3], 64, 64, 4
    $region5: #{tpu_custom_call.1} parent=1 // pred_fallthru
      _
    // Predicated region
    $region6: #{tpu_custom_call.1} parent=1 // pred_check
      _
    $region7: #{tpu_custom_call.1} parent=1 // pred_check_branch
      %23 = sbr.rel (0) target = $region9
    $region8: #{tpu_custom_call.1} parent=1 // pred_region
      %s25 = ssub.s32 128, 128
      %26 = vsyncadd [#allocation6], %s25
      %s28 = sshll.u32 [#allocation5], 4
      %s29 = int_to_ptr.vmem [resolvable:$true] %s28
      %31 = dma.hbm_to_vmem [thread:$0]  %s1, 128, %s29, [#allocation6]
    $region9: #{tpu_custom_call.1} parent=1 // pred_fallthru
      _
    // Predicated region
    $region10: #{tpu_custom_call.1} parent=1 // pred_check
      _
    $region11: #{tpu_custom_call.1} parent=1 // pred_check_branch
      %33 = sbr.rel (0) target = $region13
    $region12: #{tpu_custom_call.1} parent=1 // pred_region
      %34 = dma.done [#allocation3], 256
    $region13: #{tpu_custom_call.1} parent=1 // pred_fallthru
      _
    // Predicated region
    $region14: #{tpu_custom_call.1} parent=1 // pred_check
      _
    $region15: #{tpu_custom_call.1} parent=1 // pred_check_branch
      %36 = sbr.rel (0) target = $region17
    $region16: #{tpu_custom_call.1} parent=1 // pred_region
      %37 = dma.done [#allocation6], 128
    $region17: #{tpu_custom_call.1} parent=1 // pred_fallthru
      _
    %v39 = vld [vmem:[#allocation2] sm:$0xf]
    %v40 = vld [vmem:[#allocation2 + $0x4] sm:$0xf]
    %v41 = vld [vmem:[#allocation2 + $0x8] sm:$0xf]
    %v42 = vld [vmem:[#allocation2 + $0xc] sm:$0xf]
    %v43 = vld [vmem:[#allocation5] sm:$0xff]
    %v44 = vpack.c.bf16 %v43, %v43
    %v49 = vunpack.c.l.b16 %v39
    %v50 = vunpack.c.l.b16 %v40
    %v51 = vunpack.c.l.b16 %v41
    %v52 = vunpack.c.l.b16 %v42
    %v53 = vpack.c.b16 %v50, %v49
    %v54 = vpack.c.b16 %v52, %v51
    %57 = vxpose.xlu0.c.b16.start [1/8] %v53, 128
    %58 = vxpose.xlu0.c.b16.cont [2/8] %v54, 128
    %59 = vxpose.xlu0.c.b16.cont [3/8] 0, 128
    %60 = vxpose.xlu0.c.b16.cont [4/8] 0, 128
    %61 = vxpose.xlu0.c.b16.cont [5/8] 0, 128
    %62 = vxpose.xlu0.c.b16.cont [6/8] 0, 128
    %63 = vxpose.xlu0.c.b16.cont [7/8] 0, 128
    %64 = vxpose.xlu0.c.b16.end [8/8] 0, 128
    %v65 = vpop.trf.xlu0
    %v66 = vpop.trf.xlu0
    %v67 = vpop.trf.xlu0
    %v68 = vpop.trf.xlu0
    %v69 = vpop.trf.xlu0
    %v70 = vpop.trf.xlu0
    %v71 = vpop.trf.xlu0
    %v72 = vpop.trf.xlu0
    %vm73 = vcmask 261120
    %v75 = vsel %vm73, %v65, 0
    %v78 = vsel %vm73, %v66, 0
    %v81 = vsel %vm73, %v67, 0
    %v84 = vsel %vm73, %v68, 0
    %v87 = vsel %vm73, %v69, 0
    %v90 = vsel %vm73, %v70, 0
    %v93 = vsel %vm73, %v71, 0
    %v96 = vsel %vm73, %v72, 0
    %98 = vmatprep.subr.bf16.mxu0 0
    %99 = vmatpush1.bf16.msra.mxu0 0
    %100 = vmatprep.subr.bf16.mxu0 0
    %101 = vmatpush1.bf16.msra.mxu0 0
    %102 = vmatprep.subr.bf16.mxu0 0
    %103 = vmatpush1.bf16.msra.mxu0 0
    %104 = vmatprep.subr.bf16.mxu0 0
    %105 = vmatpush1.bf16.msra.mxu0 0
    %106 = vmatprep.subr.bf16.mxu0 0
    %107 = vmatpush1.bf16.msra.mxu0 0
    %108 = vmatprep.subr.bf16.mxu0 0
    %109 = vmatpush1.bf16.msra.mxu0 0
    %110 = vmatprep.subr.bf16.mxu0 0
    %111 = vmatpush1.bf16.msra.mxu0 %v54
    %112 = vmatprep.subr.bf16.mxu0 0
    %113 = vmatpush1.bf16.msra.mxu0 %v53
    %114 = vmatprep.subr.bf16.mxu0 0
    %115 = vmatpush2.bf16.msra.mxu0 0
    %116 = vmatprep.subr.bf16.mxu0 0
    %117 = vmatpush2.bf16.msra.mxu0 0
    %118 = vmatprep.subr.bf16.mxu0 0
    %119 = vmatpush2.bf16.msra.mxu0 0
    %120 = vmatprep.subr.bf16.mxu0 0
    %121 = vmatpush2.bf16.msra.mxu0 0
    %122 = vmatprep.subr.bf16.mxu0 0
    %123 = vmatpush2.bf16.msra.mxu0 0
    %124 = vmatprep.subr.bf16.mxu0 0
    %125 = vmatpush2.bf16.msra.mxu0 0
    %126 = vmatprep.subr.bf16.mxu0 0
    %127 = vmatpush2.bf16.msra.mxu0 0
    %128 = vmatprep.subr.bf16.mxu0 0
    %129 = vmatpush2.bf16.msra.mxu0 0
    %130 = vmatprep.mubr.bf16.mxu0 0
    %131 = vmatmul.mubr.bf16.gmra.mxu0 %v75
    %v132 = vpop.f32.mrf.mxu0
    %v133 = vadd.f32 0.0, %v132
    %v134 = vpop.f32.mrf.mxu0
    %v135 = vpop.f32.mrf.mxu0
    %v136 = vadd.f32 0.0, %v135
    %v137 = vpop.f32.mrf.mxu0
    %138 = vmatprep.mubr.bf16.mxu0 0
    %139 = vmatmul.mubr.bf16.gmra.mxu0 %v78
    %v140 = vpop.f32.mrf.mxu0
    %v141 = vadd.f32 0.0, %v140
    %v142 = vpop.f32.mrf.mxu0
    %v143 = vpop.f32.mrf.mxu0
    %v144 = vadd.f32 0.0, %v143
    %v145 = vpop.f32.mrf.mxu0
    %146 = vmatprep.mubr.bf16.mxu0 0
    %147 = vmatmul.mubr.bf16.gmra.mxu0 %v81
    %v148 = vpop.f32.mrf.mxu0
    %v149 = vadd.f32 0.0, %v148
    %v150 = vpop.f32.mrf.mxu0
    %v151 = vpop.f32.mrf.mxu0
    %v152 = vadd.f32 0.0, %v151
    %v153 = vpop.f32.mrf.mxu0
    %154 = vmatprep.mubr.bf16.mxu0 0
    %155 = vmatmul.mubr.bf16.gmra.mxu0 %v84
    %v156 = vpop.f32.mrf.mxu0
    %v157 = vadd.f32 0.0, %v156
    %v158 = vpop.f32.mrf.mxu0
    %v159 = vpop.f32.mrf.mxu0
    %v160 = vadd.f32 0.0, %v159
    %v161 = vpop.f32.mrf.mxu0
    %162 = vmatprep.mubr.bf16.mxu0 0
    %163 = vmatmul.mubr.bf16.gmra.mxu0 %v87
    %v164 = vpop.f32.mrf.mxu0
    %v165 = vadd.f32 0.0, %v164
    %v166 = vpop.f32.mrf.mxu0
    %v167 = vpop.f32.mrf.mxu0
    %v168 = vadd.f32 0.0, %v167
    %v169 = vpop.f32.mrf.mxu0
    %170 = vmatprep.mubr.bf16.mxu0 0
    %171 = vmatmul.mubr.bf16.gmra.mxu0 %v90
    %v172 = vpop.f32.mrf.mxu0
    %v173 = vadd.f32 0.0, %v172
    %v174 = vpop.f32.mrf.mxu0
    %v175 = vpop.f32.mrf.mxu0
    %v176 = vadd.f32 0.0, %v175
    %v177 = vpop.f32.mrf.mxu0
    %178 = vmatprep.mubr.bf16.mxu0 0
    %179 = vmatmul.mubr.bf16.gmra.mxu0 %v93
    %v180 = vpop.f32.mrf.mxu0
    %v181 = vadd.f32 0.0, %v180
    %v182 = vpop.f32.mrf.mxu0
    %v183 = vpop.f32.mrf.mxu0
    %v184 = vadd.f32 0.0, %v183
    %v185 = vpop.f32.mrf.mxu0
    %186 = vmatprep.mubr.bf16.mxu0 0
    %187 = vmatmul.mubr.bf16.gmra.mxu0 %v96
    %v188 = vpop.f32.mrf.mxu0
    %v189 = vadd.f32 0.0, %v188
    %v190 = vpop.f32.mrf.mxu0
    %v191 = vpop.f32.mrf.mxu0
    %v192 = vadd.f32 0.0, %v191
    %v193 = vpop.f32.mrf.mxu0
    %194 = vdwg.mxu0
    %v196 = vsel %vm73, %v44, 0
    %198 = vmatprep.subr.bf16.mxu0 0
    %199 = vmatpush1.bf16.msra.mxu0 0
    %200 = vmatprep.subr.bf16.mxu0 0
    %201 = vmatpush1.bf16.msra.mxu0 0
    %202 = vmatprep.subr.bf16.mxu0 0
    %203 = vmatpush1.bf16.msra.mxu0 0
    %204 = vmatprep.subr.bf16.mxu0 0
    %205 = vmatpush1.bf16.msra.mxu0 0
    %206 = vmatprep.subr.bf16.mxu0 0
    %207 = vmatpush1.bf16.msra.mxu0 0
    %208 = vmatprep.subr.bf16.mxu0 0
    %209 = vmatpush1.bf16.msra.mxu0 0
    %210 = vmatprep.subr.bf16.mxu0 0
    %211 = vmatpush1.bf16.msra.mxu0 %v54
    %212 = vmatprep.subr.bf16.mxu0 0
    %213 = vmatpush1.bf16.msra.mxu0 %v53
    %214 = vmatprep.subr.bf16.mxu0 0
    %215 = vmatpush2.bf16.msra.mxu0 0
    %216 = vmatprep.subr.bf16.mxu0 0
    %217 = vmatpush2.bf16.msra.mxu0 0
    %218 = vmatprep.subr.bf16.mxu0 0
    %219 = vmatpush2.bf16.msra.mxu0 0
    %220 = vmatprep.subr.bf16.mxu0 0
    %221 = vmatpush2.bf16.msra.mxu0 0
    %222 = vmatprep.subr.bf16.mxu0 0
    %223 = vmatpush2.bf16.msra.mxu0 0
    %224 = vmatprep.subr.bf16.mxu0 0
    %225 = vmatpush2.bf16.msra.mxu0 0
    %226 = vmatprep.subr.bf16.mxu0 0
    %227 = vmatpush2.bf16.msra.mxu0 0
    %228 = vmatprep.subr.bf16.mxu0 0
    %229 = vmatpush2.bf16.msra.mxu0 0
    %230 = vmatprep.mubr.bf16.mxu0 0
    %231 = vmatmul.mubr.bf16.gmra.mxu0 %v196
    %v232 = vpop.f32.mrf.mxu0
    %v233 = vadd.f32 0.0, %v232
    %v234 = vpop.f32.mrf.mxu0
    %v235 = vpop.f32.mrf.mxu0
    %v236 = vpop.f32.mrf.mxu0
    %237 = vdwg.mxu0
    %v238 = vlaneseq
    %v239 = vshrl.u32 %v238, 7
    %v240 = vadd.s32 %v239, 8
    %v241 = vadd.s32 %v239, 16
    %v242 = vadd.s32 %v239, 24
    %v243 = vadd.s32 %v239, 32
    %v244 = vadd.s32 %v239, 40
    %v245 = vadd.s32 %v239, 48
    %v246 = vadd.s32 %v239, 56
    %v247 = vadd.s32 %v239, 64
    %v248 = vadd.s32 %v239, 72
    %v249 = vadd.s32 %v239, 80
    %v250 = vadd.s32 %v239, 88
    %v251 = vadd.s32 %v239, 96
    %v252 = vadd.s32 %v239, 104
    %v253 = vadd.s32 %v239, 112
    %v254 = vadd.s32 %v239, 120
    %v255 = vlaneseq
    %v256 = vand.u32 %v255, 127
    %vm257 = vcmp.eq.s32.totalorder %v239, %v256
    %vm258 = vcmp.eq.s32.totalorder %v240, %v256
    %vm259 = vcmp.eq.s32.totalorder %v241, %v256
    %vm260 = vcmp.eq.s32.totalorder %v242, %v256
    %vm261 = vcmp.eq.s32.totalorder %v243, %v256
    %vm262 = vcmp.eq.s32.totalorder %v244, %v256
    %vm263 = vcmp.eq.s32.totalorder %v245, %v256
    %vm264 = vcmp.eq.s32.totalorder %v246, %v256
    %vm265 = vcmp.eq.s32.totalorder %v247, %v256
    %vm266 = vcmp.eq.s32.totalorder %v248, %v256
    %vm267 = vcmp.eq.s32.totalorder %v249, %v256
    %vm268 = vcmp.eq.s32.totalorder %v250, %v256
    %vm269 = vcmp.eq.s32.totalorder %v251, %v256
    %vm270 = vcmp.eq.s32.totalorder %v252, %v256
    %vm271 = vcmp.eq.s32.totalorder %v253, %v256
    %vm272 = vcmp.eq.s32.totalorder %v254, %v256
    %v273 = vsel %vm257, 1, 0
    %v274 = vsel %vm258, 1, 0
    %v275 = vsel %vm259, 1, 0
    %v276 = vsel %vm260, 1, 0
    %v277 = vsel %vm261, 1, 0
    %v278 = vsel %vm262, 1, 0
    %v279 = vsel %vm263, 1, 0
    %v280 = vsel %vm264, 1, 0
    %v281 = vsel %vm265, 1, 0
    %v282 = vsel %vm266, 1, 0
    %v283 = vsel %vm267, 1, 0
    %v284 = vsel %vm268, 1, 0
    %v285 = vsel %vm269, 1, 0
    %v286 = vsel %vm270, 1, 0
    %v287 = vsel %vm271, 1, 0
    %v288 = vsel %vm272, 1, 0
    %v289 = vcvt.s32.f32 %v273
    %v290 = vcvt.s32.f32 %v274
    %v291 = vcvt.s32.f32 %v275
    %v292 = vcvt.s32.f32 %v276
    %v293 = vcvt.s32.f32 %v277
    %v294 = vcvt.s32.f32 %v278
    %v295 = vcvt.s32.f32 %v279
    %v296 = vcvt.s32.f32 %v280
    %v297 = vcvt.s32.f32 %v281
    %v298 = vcvt.s32.f32 %v282
    %v299 = vcvt.s32.f32 %v283
    %v300 = vcvt.s32.f32 %v284
    %v301 = vcvt.s32.f32 %v285
    %v302 = vcvt.s32.f32 %v286
    %v303 = vcvt.s32.f32 %v287
    %v304 = vcvt.s32.f32 %v288
    %v305 = vmul.f32 %v133, 0.1
    %v306 = vmul.f32 %v136, 0.1
    %v307 = vmul.f32 %v141, 0.1
    %v308 = vmul.f32 %v144, 0.1
    %v309 = vmul.f32 %v149, 0.1
    %v310 = vmul.f32 %v152, 0.1
    %v311 = vmul.f32 %v157, 0.1
    %v312 = vmul.f32 %v160, 0.1
    %v313 = vmul.f32 %v165, 0.1
    %v314 = vmul.f32 %v168, 0.1
    %v315 = vmul.f32 %v173, 0.1
    %v316 = vmul.f32 %v176, 0.1
    %v317 = vmul.f32 %v181, 0.1
    %v318 = vmul.f32 %v184, 0.1
    %v319 = vmul.f32 %v189, 0.1
    %v320 = vmul.f32 %v192, 0.1
    %v321 = vsub.f32 %v289, %v305
    %v322 = vsub.f32 %v290, %v306
    %v323 = vsub.f32 %v291, %v307
    %v324 = vsub.f32 %v292, %v308
    %v325 = vsub.f32 %v293, %v309
    %v326 = vsub.f32 %v294, %v310
    %v327 = vsub.f32 %v295, %v311
    %v328 = vsub.f32 %v296, %v312
    %v329 = vsub.f32 %v297, %v313
    %v330 = vsub.f32 %v298, %v314
    %v331 = vsub.f32 %v299, %v315
    %v332 = vsub.f32 %v300, %v316
    %v333 = vsub.f32 %v301, %v317
    %v334 = vsub.f32 %v302, %v318
    %v335 = vsub.f32 %v303, %v319
    %v336 = vsub.f32 %v304, %v320
    %v337 = vpack.c.bf16 %v322, %v321
    %v338 = vpack.c.bf16 %v324, %v323
    %v339 = vpack.c.bf16 %v326, %v325
    %v340 = vpack.c.bf16 %v328, %v327
    %v341 = vpack.c.bf16 %v330, %v329
    %v342 = vpack.c.bf16 %v332, %v331
    %v343 = vpack.c.bf16 %v334, %v333
    %v344 = vpack.c.bf16 %v336, %v335
    %v345 = vmul.f32 %v233, 0.1
    %v346 = vpack.c.bf16 %v345, %v345
    %347 = vmatprep.subr.bf16.mxu0 0
    %348 = vmatpush1.bf16.msra.mxu0 %v344
    %349 = vmatprep.subr.bf16.mxu0 0
    %350 = vmatpush1.bf16.msra.mxu0 %v343
    %351 = vmatprep.subr.bf16.mxu0 0
    %352 = vmatpush1.bf16.msra.mxu0 %v342
    %353 = vmatprep.subr.bf16.mxu0 0
    %354 = vmatpush1.bf16.msra.mxu0 %v341
    %355 = vmatprep.subr.bf16.mxu0 0
    %356 = vmatpush1.bf16.msra.mxu0 %v340
    %357 = vmatprep.subr.bf16.mxu0 0
    %358 = vmatpush1.bf16.msra.mxu0 %v339
    %359 = vmatprep.subr.bf16.mxu0 0
    %360 = vmatpush1.bf16.msra.mxu0 %v338
    %361 = vmatprep.subr.bf16.mxu0 0
    %362 = vmatpush1.bf16.msra.mxu0 %v337
    %363 = vmatprep.subr.bf16.mxu0 0
    %364 = vmatpush2.bf16.msra.mxu0 0
    %365 = vmatprep.subr.bf16.mxu0 0
    %366 = vmatpush2.bf16.msra.mxu0 0
    %367 = vmatprep.subr.bf16.mxu0 0
    %368 = vmatpush2.bf16.msra.mxu0 0
    %369 = vmatprep.subr.bf16.mxu0 0
    %370 = vmatpush2.bf16.msra.mxu0 0
    %371 = vmatprep.subr.bf16.mxu0 0
    %372 = vmatpush2.bf16.msra.mxu0 0
    %373 = vmatprep.subr.bf16.mxu0 0
    %374 = vmatpush2.bf16.msra.mxu0 0
    %375 = vmatprep.subr.bf16.mxu0 0
    %376 = vmatpush2.bf16.msra.mxu0 0
    %377 = vmatprep.subr.bf16.mxu0 0
    %378 = vmatpush2.bf16.msra.mxu0 0
    %379 = vmatprep.mubr.bf16.mxu0 0
    %380 = vmatmul.mubr.bf16.gmra.mxu0 %v346
    %v381 = vpop.f32.mrf.mxu0
    %v382 = vadd.f32 %v345, %v381
    %v383 = vpop.f32.mrf.mxu0
    %v384 = vpop.f32.mrf.mxu0
    %v385 = vpop.f32.mrf.mxu0
    %386 = vdwg.mxu0
    %v387 = vpack.c.bf16 %v382, %v382
    %388 = vmatprep.subr.bf16.mxu0 0
    %389 = vmatpush1.bf16.msra.mxu0 %v344
    %390 = vmatprep.subr.bf16.mxu0 0
    %391 = vmatpush1.bf16.msra.mxu0 %v343
    %392 = vmatprep.subr.bf16.mxu0 0
    %393 = vmatpush1.bf16.msra.mxu0 %v342
    %394 = vmatprep.subr.bf16.mxu0 0
    %395 = vmatpush1.bf16.msra.mxu0 %v341
    %396 = vmatprep.subr.bf16.mxu0 0
    %397 = vmatpush1.bf16.msra.mxu0 %v340
    %398 = vmatprep.subr.bf16.mxu0 0
    %399 = vmatpush1.bf16.msra.mxu0 %v339
    %400 = vmatprep.subr.bf16.mxu0 0
    %401 = vmatpush1.bf16.msra.mxu0 %v338
    %402 = vmatprep.subr.bf16.mxu0 0
    %403 = vmatpush1.bf16.msra.mxu0 %v337
    %404 = vmatprep.subr.bf16.mxu0 0
    %405 = vmatpush2.bf16.msra.mxu0 0
    %406 = vmatprep.subr.bf16.mxu0 0
    %407 = vmatpush2.bf16.msra.mxu0 0
    %408 = vmatprep.subr.bf16.mxu0 0
    %409 = vmatpush2.bf16.msra.mxu0 0
    %410 = vmatprep.subr.bf16.mxu0 0
    %411 = vmatpush2.bf16.msra.mxu0 0
    %412 = vmatprep.subr.bf16.mxu0 0
    %413 = vmatpush2.bf16.msra.mxu0 0
    %414 = vmatprep.subr.bf16.mxu0 0
    %415 = vmatpush2.bf16.msra.mxu0 0
    %416 = vmatprep.subr.bf16.mxu0 0
    %417 = vmatpush2.bf16.msra.mxu0 0
    %418 = vmatprep.subr.bf16.mxu0 0
    %419 = vmatpush2.bf16.msra.mxu0 0
    %420 = vmatprep.mubr.bf16.mxu0 0
    %421 = vmatmul.mubr.bf16.gmra.mxu0 %v387
    %v422 = vpop.f32.mrf.mxu0
    %v423 = vadd.f32 %v345, %v422
    %v424 = vpop.f32.mrf.mxu0
    %v425 = vpop.f32.mrf.mxu0
    %v426 = vpop.f32.mrf.mxu0
    %427 = vdwg.mxu0
    %v428 = vpack.c.bf16 %v423, %v423
    %429 = vmatprep.subr.bf16.mxu0 0
    %430 = vmatpush1.bf16.msra.mxu0 %v344
    %431 = vmatprep.subr.bf16.mxu0 0
    %432 = vmatpush1.bf16.msra.mxu0 %v343
    %433 = vmatprep.subr.bf16.mxu0 0
    %434 = vmatpush1.bf16.msra.mxu0 %v342
    %435 = vmatprep.subr.bf16.mxu0 0
    %436 = vmatpush1.bf16.msra.mxu0 %v341
    %437 = vmatprep.subr.bf16.mxu0 0
    %438 = vmatpush1.bf16.msra.mxu0 %v340
    %439 = vmatprep.subr.bf16.mxu0 0
    %440 = vmatpush1.bf16.msra.mxu0 %v339
    %441 = vmatprep.subr.bf16.mxu0 0
    %442 = vmatpush1.bf16.msra.mxu0 %v338
    %443 = vmatprep.subr.bf16.mxu0 0
    %444 = vmatpush1.bf16.msra.mxu0 %v337
    %445 = vmatprep.subr.bf16.mxu0 0
    %446 = vmatpush2.bf16.msra.mxu0 0
    %447 = vmatprep.subr.bf16.mxu0 0
    %448 = vmatpush2.bf16.msra.mxu0 0
    %449 = vmatprep.subr.bf16.mxu0 0
    %450 = vmatpush2.bf16.msra.mxu0 0
    %451 = vmatprep.subr.bf16.mxu0 0
    %452 = vmatpush2.bf16.msra.mxu0 0
    %453 = vmatprep.subr.bf16.mxu0 0
    %454 = vmatpush2.bf16.msra.mxu0 0
    %455 = vmatprep.subr.bf16.mxu0 0
    %456 = vmatpush2.bf16.msra.mxu0 0
    %457 = vmatprep.subr.bf16.mxu0 0
    %458 = vmatpush2.bf16.msra.mxu0 0
    %459 = vmatprep.subr.bf16.mxu0 0
    %460 = vmatpush2.bf16.msra.mxu0 0
    %461 = vmatprep.mubr.bf16.mxu0 0
    %462 = vmatmul.mubr.bf16.gmra.mxu0 %v428
    %v463 = vpop.f32.mrf.mxu0
    %v464 = vadd.f32 %v345, %v463
    %v465 = vpop.f32.mrf.mxu0
    %v466 = vpop.f32.mrf.mxu0
    %v467 = vpop.f32.mrf.mxu0
    %468 = vdwg.mxu0
    %v469 = vpack.c.bf16 %v464, %v464
    %470 = vmatprep.subr.bf16.mxu0 0
    %471 = vmatpush1.bf16.msra.mxu0 %v344
    %472 = vmatprep.subr.bf16.mxu0 0
    %473 = vmatpush1.bf16.msra.mxu0 %v343
    %474 = vmatprep.subr.bf16.mxu0 0
    %475 = vmatpush1.bf16.msra.mxu0 %v342
    %476 = vmatprep.subr.bf16.mxu0 0
    %477 = vmatpush1.bf16.msra.mxu0 %v341
    %478 = vmatprep.subr.bf16.mxu0 0
    %479 = vmatpush1.bf16.msra.mxu0 %v340
    %480 = vmatprep.subr.bf16.mxu0 0
    %481 = vmatpush1.bf16.msra.mxu0 %v339
    %482 = vmatprep.subr.bf16.mxu0 0
    %483 = vmatpush1.bf16.msra.mxu0 %v338
    %484 = vmatprep.subr.bf16.mxu0 0
    %485 = vmatpush1.bf16.msra.mxu0 %v337
    %486 = vmatprep.subr.bf16.mxu0 0
    %487 = vmatpush2.bf16.msra.mxu0 0
    %488 = vmatprep.subr.bf16.mxu0 0
    %489 = vmatpush2.bf16.msra.mxu0 0
    %490 = vmatprep.subr.bf16.mxu0 0
    %491 = vmatpush2.bf16.msra.mxu0 0
    %492 = vmatprep.subr.bf16.mxu0 0
    %493 = vmatpush2.bf16.msra.mxu0 0
    %494 = vmatprep.subr.bf16.mxu0 0
    %495 = vmatpush2.bf16.msra.mxu0 0
    %496 = vmatprep.subr.bf16.mxu0 0
    %497 = vmatpush2.bf16.msra.mxu0 0
    %498 = vmatprep.subr.bf16.mxu0 0
    %499 = vmatpush2.bf16.msra.mxu0 0
    %500 = vmatprep.subr.bf16.mxu0 0
    %501 = vmatpush2.bf16.msra.mxu0 0
    %502 = vmatprep.mubr.bf16.mxu0 0
    %503 = vmatmul.mubr.bf16.gmra.mxu0 %v469
    %v504 = vpop.f32.mrf.mxu0
    %v505 = vadd.f32 %v345, %v504
    %v506 = vpop.f32.mrf.mxu0
    %v507 = vpop.f32.mrf.mxu0
    %v508 = vpop.f32.mrf.mxu0
    %509 = vdwg.mxu0
    %v510 = vpack.c.bf16 %v505, %v505
    %511 = vmatprep.subr.bf16.mxu0 0
    %512 = vmatpush1.bf16.msra.mxu0 %v344
    %513 = vmatprep.subr.bf16.mxu0 0
    %514 = vmatpush1.bf16.msra.mxu0 %v343
    %515 = vmatprep.subr.bf16.mxu0 0
    %516 = vmatpush1.bf16.msra.mxu0 %v342
    %517 = vmatprep.subr.bf16.mxu0 0
    %518 = vmatpush1.bf16.msra.mxu0 %v341
    %519 = vmatprep.subr.bf16.mxu0 0
    %520 = vmatpush1.bf16.msra.mxu0 %v340
    %521 = vmatprep.subr.bf16.mxu0 0
    %522 = vmatpush1.bf16.msra.mxu0 %v339
    %523 = vmatprep.subr.bf16.mxu0 0
    %524 = vmatpush1.bf16.msra.mxu0 %v338
    %525 = vmatprep.subr.bf16.mxu0 0
    %526 = vmatpush1.bf16.msra.mxu0 %v337
    %527 = vmatprep.subr.bf16.mxu0 0
    %528 = vmatpush2.bf16.msra.mxu0 0
    %529 = vmatprep.subr.bf16.mxu0 0
    %530 = vmatpush2.bf16.msra.mxu0 0
    %531 = vmatprep.subr.bf16.mxu0 0
    %532 = vmatpush2.bf16.msra.mxu0 0
    %533 = vmatprep.subr.bf16.mxu0 0
    %534 = vmatpush2.bf16.msra.mxu0 0
    %535 = vmatprep.subr.bf16.mxu0 0
    %536 = vmatpush2.bf16.msra.mxu0 0
    %537 = vmatprep.subr.bf16.mxu0 0
    %538 = vmatpush2.bf16.msra.mxu0 0
    %539 = vmatprep.subr.bf16.mxu0 0
    %540 = vmatpush2.bf16.msra.mxu0 0
    %541 = vmatprep.subr.bf16.mxu0 0
    %542 = vmatpush2.bf16.msra.mxu0 0
    %543 = vmatprep.mubr.bf16.mxu0 0
    %544 = vmatmul.mubr.bf16.gmra.mxu0 %v510
    %v545 = vpop.f32.mrf.mxu0
    %v546 = vadd.f32 %v345, %v545
    %v547 = vpop.f32.mrf.mxu0
    %v548 = vpop.f32.mrf.mxu0
    %v549 = vpop.f32.mrf.mxu0
    %550 = vdwg.mxu0
    %v551 = vpack.c.bf16 %v546, %v546
    %552 = vmatprep.subr.bf16.mxu0 0
    %553 = vmatpush1.bf16.msra.mxu0 %v344
    %554 = vmatprep.subr.bf16.mxu0 0
    %555 = vmatpush1.bf16.msra.mxu0 %v343
    %556 = vmatprep.subr.bf16.mxu0 0
    %557 = vmatpush1.bf16.msra.mxu0 %v342
    %558 = vmatprep.subr.bf16.mxu0 0
    %559 = vmatpush1.bf16.msra.mxu0 %v341
    %560 = vmatprep.subr.bf16.mxu0 0
    %561 = vmatpush1.bf16.msra.mxu0 %v340
    %562 = vmatprep.subr.bf16.mxu0 0
    %563 = vmatpush1.bf16.msra.mxu0 %v339
    %564 = vmatprep.subr.bf16.mxu0 0
    %565 = vmatpush1.bf16.msra.mxu0 %v338
    %566 = vmatprep.subr.bf16.mxu0 0
    %567 = vmatpush1.bf16.msra.mxu0 %v337
    %568 = vmatprep.subr.bf16.mxu0 0
    %569 = vmatpush2.bf16.msra.mxu0 0
    %570 = vmatprep.subr.bf16.mxu0 0
    %571 = vmatpush2.bf16.msra.mxu0 0
    %572 = vmatprep.subr.bf16.mxu0 0
    %573 = vmatpush2.bf16.msra.mxu0 0
    %574 = vmatprep.subr.bf16.mxu0 0
    %575 = vmatpush2.bf16.msra.mxu0 0
    %576 = vmatprep.subr.bf16.mxu0 0
    %577 = vmatpush2.bf16.msra.mxu0 0
    %578 = vmatprep.subr.bf16.mxu0 0
    %579 = vmatpush2.bf16.msra.mxu0 0
    %580 = vmatprep.subr.bf16.mxu0 0
    %581 = vmatpush2.bf16.msra.mxu0 0
    %582 = vmatprep.subr.bf16.mxu0 0
    %583 = vmatpush2.bf16.msra.mxu0 0
    %584 = vmatprep.mubr.bf16.mxu0 0
    %585 = vmatmul.mubr.bf16.gmra.mxu0 %v551
    %v586 = vpop.f32.mrf.mxu0
    %v587 = vadd.f32 %v345, %v586
    %v588 = vpop.f32.mrf.mxu0
    %v589 = vpop.f32.mrf.mxu0
    %v590 = vpop.f32.mrf.mxu0
    %591 = vdwg.mxu0
    %v592 = vpack.c.bf16 %v587, %v587
    %593 = vmatprep.subr.bf16.mxu0 0
    %594 = vmatpush1.bf16.msra.mxu0 %v344
    %595 = vmatprep.subr.bf16.mxu0 0
    %596 = vmatpush1.bf16.msra.mxu0 %v343
    %597 = vmatprep.subr.bf16.mxu0 0
    %598 = vmatpush1.bf16.msra.mxu0 %v342
    %599 = vmatprep.subr.bf16.mxu0 0
    %600 = vmatpush1.bf16.msra.mxu0 %v341
    %601 = vmatprep.subr.bf16.mxu0 0
    %602 = vmatpush1.bf16.msra.mxu0 %v340
    %603 = vmatprep.subr.bf16.mxu0 0
    %604 = vmatpush1.bf16.msra.mxu0 %v339
    %605 = vmatprep.subr.bf16.mxu0 0
    %606 = vmatpush1.bf16.msra.mxu0 %v338
    %607 = vmatprep.subr.bf16.mxu0 0
    %608 = vmatpush1.bf16.msra.mxu0 %v337
    %609 = vmatprep.subr.bf16.mxu0 0
    %610 = vmatpush2.bf16.msra.mxu0 0
    %611 = vmatprep.subr.bf16.mxu0 0
    %612 = vmatpush2.bf16.msra.mxu0 0
    %613 = vmatprep.subr.bf16.mxu0 0
    %614 = vmatpush2.bf16.msra.mxu0 0
    %615 = vmatprep.subr.bf16.mxu0 0
    %616 = vmatpush2.bf16.msra.mxu0 0
    %617 = vmatprep.subr.bf16.mxu0 0
    %618 = vmatpush2.bf16.msra.mxu0 0
    %619 = vmatprep.subr.bf16.mxu0 0
    %620 = vmatpush2.bf16.msra.mxu0 0
    %621 = vmatprep.subr.bf16.mxu0 0
    %622 = vmatpush2.bf16.msra.mxu0 0
    %623 = vmatprep.subr.bf16.mxu0 0
    %624 = vmatpush2.bf16.msra.mxu0 0
    %625 = vmatprep.mubr.bf16.mxu0 0
    %626 = vmatmul.mubr.bf16.gmra.mxu0 %v592
    %v627 = vpop.f32.mrf.mxu0
    %v628 = vadd.f32 %v345, %v627
    %v629 = vpop.f32.mrf.mxu0
    %v630 = vpop.f32.mrf.mxu0
    %v631 = vpop.f32.mrf.mxu0
    %632 = vdwg.mxu0
    %v633 = vpack.c.bf16 %v628, %v628
    %634 = vmatprep.subr.bf16.mxu0 0
    %635 = vmatpush1.bf16.msra.mxu0 %v344
    %636 = vmatprep.subr.bf16.mxu0 0
    %637 = vmatpush1.bf16.msra.mxu0 %v343
    %638 = vmatprep.subr.bf16.mxu0 0
    %639 = vmatpush1.bf16.msra.mxu0 %v342
    %640 = vmatprep.subr.bf16.mxu0 0
    %641 = vmatpush1.bf16.msra.mxu0 %v341
    %642 = vmatprep.subr.bf16.mxu0 0
    %643 = vmatpush1.bf16.msra.mxu0 %v340
    %644 = vmatprep.subr.bf16.mxu0 0
    %645 = vmatpush1.bf16.msra.mxu0 %v339
    %646 = vmatprep.subr.bf16.mxu0 0
    %647 = vmatpush1.bf16.msra.mxu0 %v338
    %648 = vmatprep.subr.bf16.mxu0 0
    %649 = vmatpush1.bf16.msra.mxu0 %v337
    %650 = vmatprep.subr.bf16.mxu0 0
    %651 = vmatpush2.bf16.msra.mxu0 0
    %652 = vmatprep.subr.bf16.mxu0 0
    %653 = vmatpush2.bf16.msra.mxu0 0
    %654 = vmatprep.subr.bf16.mxu0 0
    %655 = vmatpush2.bf16.msra.mxu0 0
    %656 = vmatprep.subr.bf16.mxu0 0
    %657 = vmatpush2.bf16.msra.mxu0 0
    %658 = vmatprep.subr.bf16.mxu0 0
    %659 = vmatpush2.bf16.msra.mxu0 0
    %660 = vmatprep.subr.bf16.mxu0 0
    %661 = vmatpush2.bf16.msra.mxu0 0
    %662 = vmatprep.subr.bf16.mxu0 0
    %663 = vmatpush2.bf16.msra.mxu0 0
    %664 = vmatprep.subr.bf16.mxu0 0
    %665 = vmatpush2.bf16.msra.mxu0 0
    %666 = vmatprep.mubr.bf16.mxu0 0
    %667 = vmatmul.mubr.bf16.gmra.mxu0 %v633
    %v668 = vpop.f32.mrf.mxu0
    %v669 = vadd.f32 %v345, %v668
    %v670 = vpop.f32.mrf.mxu0
    %v671 = vpop.f32.mrf.mxu0
    %v672 = vpop.f32.mrf.mxu0
    %673 = vdwg.mxu0
    %v674 = vpack.c.bf16 %v669, %v669
    %675 = vmatprep.subr.bf16.mxu0 0
    %676 = vmatpush1.bf16.msra.mxu0 %v344
    %677 = vmatprep.subr.bf16.mxu0 0
    %678 = vmatpush1.bf16.msra.mxu0 %v343
    %679 = vmatprep.subr.bf16.mxu0 0
    %680 = vmatpush1.bf16.msra.mxu0 %v342
    %681 = vmatprep.subr.bf16.mxu0 0
    %682 = vmatpush1.bf16.msra.mxu0 %v341
    %683 = vmatprep.subr.bf16.mxu0 0
    %684 = vmatpush1.bf16.msra.mxu0 %v340
    %685 = vmatprep.subr.bf16.mxu0 0
    %686 = vmatpush1.bf16.msra.mxu0 %v339
    %687 = vmatprep.subr.bf16.mxu0 0
    %688 = vmatpush1.bf16.msra.mxu0 %v338
    %689 = vmatprep.subr.bf16.mxu0 0
    %690 = vmatpush1.bf16.msra.mxu0 %v337
    %691 = vmatprep.subr.bf16.mxu0 0
    %692 = vmatpush2.bf16.msra.mxu0 0
    %693 = vmatprep.subr.bf16.mxu0 0
    %694 = vmatpush2.bf16.msra.mxu0 0
    %695 = vmatprep.subr.bf16.mxu0 0
    %696 = vmatpush2.bf16.msra.mxu0 0
    %697 = vmatprep.subr.bf16.mxu0 0
    %698 = vmatpush2.bf16.msra.mxu0 0
    %699 = vmatprep.subr.bf16.mxu0 0
    %700 = vmatpush2.bf16.msra.mxu0 0
    %701 = vmatprep.subr.bf16.mxu0 0
    %702 = vmatpush2.bf16.msra.mxu0 0
    %703 = vmatprep.subr.bf16.mxu0 0
    %704 = vmatpush2.bf16.msra.mxu0 0
    %705 = vmatprep.subr.bf16.mxu0 0
    %706 = vmatpush2.bf16.msra.mxu0 0
    %707 = vmatprep.mubr.bf16.mxu0 0
    %708 = vmatmul.mubr.bf16.gmra.mxu0 %v674
    %v709 = vpop.f32.mrf.mxu0
    %v710 = vadd.f32 %v345, %v709
    %v711 = vpop.f32.mrf.mxu0
    %v712 = vpop.f32.mrf.mxu0
    %v713 = vpop.f32.mrf.mxu0
    %714 = vdwg.mxu0
    %715 = vst [vmem:[#allocation7] sm:$0xff] %v710
    // Predicated region
    $region18: #{tpu_custom_call.1} parent=1 // pred_check
      _
    $region19: #{tpu_custom_call.1} parent=1 // pred_check_branch
      %717 = sbr.rel (0) target = $region21
    $region20: #{tpu_custom_call.1} parent=1 // pred_region
      %s719 = ssub.s32 128, 128
      %720 = vsyncadd [#allocation4], %s719
      %s722 = sshll.u32 [#allocation7], 4
      %s723 = int_to_ptr.vmem [resolvable:$true] %s722
      %725 = dma.vmem_to_hbm [thread:$0]  %s723, 128, %s2, [#allocation4]
    $region21: #{tpu_custom_call.1} parent=1 // pred_fallthru
      _
    // Predicated region
    $region22: #{tpu_custom_call.1} parent=1 // pred_check
      _
    $region23: #{tpu_custom_call.1} parent=1 // pred_check_branch
      %727 = sbr.rel (0) target = $region25
    $region24: #{tpu_custom_call.1} parent=1 // pred_region
      %728 = dma.done [#allocation4], 128
    $region25: #{tpu_custom_call.1} parent=1 // pred_fallthru
      _
    %729 = vsyncpa [#allocation3], 1
    %730 = vsyncpa [#allocation6], 1
    %731 = vsyncpa [#allocation4], 1

</llo_original>
